<compile_context>
chip_gen: v7x
topology: tpu7x:2x2x1
jax: 0.10.0
libtpu: 0.0.40
codegen_flags: <defaults>
</compile_context>

<pallas_src>
import jax
import jax.numpy as jnp
from jax.experimental import pallas as pl
from jax.experimental.pallas import tpu as pltpu

NODE_FEAT = 12
HIDDEN = 12
N_ACTIONS = 10

# Packed parameter slab layout (32 rows x 12 lanes), every block sublane-friendly:
#   rows [0, 12)  : W1^T   (in=12, out=12)
#   row  12       : b1     (1, 12)
#   rows [13, 16) : zero padding
#   rows [16, 28) : W2^T   (in=12, out=10), zero-padded to 12 lanes  (starts at sublane 16)
#   row  28       : b2     (1, 10), pad lanes filled with -inf
#   rows [29, 32) : zero padding
W2_ROW = 16
B2_ROW = 28
PARAM_ROWS = 32

TILE_B = 128  # batch tile for the batched variant


def _heads(p_ref):
    w1 = p_ref[0:HIDDEN, :]                     # (12, 12) (in, out)
    b1 = p_ref[HIDDEN:HIDDEN + 1, :]            # (1, 12)
    w2 = p_ref[W2_ROW:W2_ROW + HIDDEN, :]       # (12, 12) (in, out), cols 10..11 are zero
    b2 = p_ref[B2_ROW:B2_ROW + 1, :]            # (1, 12), lanes 10..11 are -inf
    return w1, b1, w2, b2


def _forward_rows(x, p_ref):
    """x: (R, 12) -> (R, 10) action probabilities (row-wise softmax)."""
    w1, b1, w2, b2 = _heads(p_ref)
    # action_head_1: Linear(12, 12) + ReLU
    h = jnp.maximum(jnp.dot(x, w1, preferred_element_type=jnp.float32) + b1, 0.0)
    # action_head_5: Linear(12, 10), computed at full 12-lane width.
    # Pad lanes: 0 (zero weight cols) + (-inf bias) = -inf -> exp() == 0 exactly,
    # so they never win the max and never contribute to the sum.
    logits = jnp.dot(h, w2, preferred_element_type=jnp.float32) + b2
    logits = logits - jnp.max(logits, axis=-1, keepdims=True)
    e = jnp.exp(logits)
    probs = e / jnp.sum(e, axis=-1, keepdims=True)   # exact divide (sums to 1)
    return probs[:, 0:N_ACTIONS]


def policy_kernel(x_ref, p_ref, out_ref):
    # x_ref: (8, 12) tile of node features; only row 0 is used by forward().
    out_ref[...] = _forward_rows(x_ref[0:1, :], p_ref)


def policy_batched_kernel(x_ref, p_ref, out_ref):
    # x_ref: (TILE_B, 12) block of many graphs' row-0 feature vectors.
    out_ref[...] = _forward_rows(x_ref[...], p_ref)


def pack_params(w1, b1, w2, b2):
    """One-time packing (do at parameter-load time, NOT per forward).

    w1: (12, 12) torch layout (out, in); b1: (12,);
    w2: (10, 12) torch layout (out, in); b2: (10,).
    Returns a single (32, 12) float32 slab, weights stored (in, out), blocks
    sublane-aligned, b2 pad lanes = -inf (softmax-neutral).
    """
    w1t = jnp.asarray(w1, jnp.float32).T                                   # (12, 12)
    b1r = jnp.asarray(b1, jnp.float32)[None, :]                            # (1, 12)
    w2t = jnp.pad(jnp.asarray(w2, jnp.float32).T,
                  ((0, 0), (0, HIDDEN - N_ACTIONS)))                       # (12, 12), zero cols
    b2r = jnp.full((1, HIDDEN), -jnp.inf, jnp.float32)
    b2r = b2r.at[0, :N_ACTIONS].set(jnp.asarray(b2, jnp.float32))          # (1, 12), -inf pads
    gap1 = jnp.zeros((W2_ROW - (HIDDEN + 1), HIDDEN), jnp.float32)         # rows 13..15
    gap2 = jnp.zeros((PARAM_ROWS - (B2_ROW + 1), HIDDEN), jnp.float32)     # rows 29..31
    slab = jnp.concatenate([w1t, b1r, gap1, w2t, b2r, gap2], axis=0)
    assert slab.shape == (PARAM_ROWS, HIDDEN)
    return slab


@jax.jit
def policy_forward(x, params):
    """Single-graph forward (module semantics).
    x: (num_nodes, 12) node features; params: packed (32, 12) slab.
    Returns (1, 10) action probabilities."""
    x = x.astype(jnp.float32)
    if x.shape[0] < 8:  # static shape check; keeps the (8, 12) input tile valid
        x = jnp.pad(x, ((0, 8 - x.shape[0]), (0, 0)))
    # Row 0 is DMA'd directly by the BlockSpec: one (8, 12) tile (384 B),
    # independent of num_nodes, with no extra wrapper-side slice op.
    return pl.pallas_call(
        policy_kernel,
        out_shape=jax.ShapeDtypeStruct((1, N_ACTIONS), jnp.float32),
        grid=(1,),
        in_specs=[pl.BlockSpec((8, NODE_FEAT), lambda i: (0, 0)),
                  pl.BlockSpec((PARAM_ROWS, HIDDEN), lambda i: (0, 0))],
        out_specs=pl.BlockSpec((1, N_ACTIONS), lambda i: (0, 0)),
    )(x, params)


@jax.jit
def policy_forward_batched(xb, params):
    """Throughput path: xb is a (B, 12) matrix of many graphs' row-0 features.
    Grid over B in TILE_B-row tiles; the batch axis is 'parallel' so v7x
    shards it across both TensorCores. Returns (B, 10)."""
    xb = xb.astype(jnp.float32)
    b = xb.shape[0]
    bp = ((b + TILE_B - 1) // TILE_B) * TILE_B
    if bp != b:
        xb = jnp.pad(xb, ((0, bp - b), (0, 0)))
    out = pl.pallas_call(
        policy_batched_kernel,
        out_shape=jax.ShapeDtypeStruct((bp, N_ACTIONS), jnp.float32),
        grid=(bp // TILE_B,),
        in_specs=[pl.BlockSpec((TILE_B, NODE_FEAT), lambda i: (i, 0)),
                  pl.BlockSpec((PARAM_ROWS, HIDDEN), lambda i: (0, 0))],
        out_specs=pl.BlockSpec((TILE_B, N_ACTIONS), lambda i: (i, 0)),
        compiler_params=pltpu.CompilerParams(
            dimension_semantics=("parallel",)),
    )(xb, params)
    return out[:b] if bp != b else out


def reference_forward(x, w1, b1, w2, b2):
    x0 = x[0]
    a1 = jnp.maximum(x0 @ w1.T + b1, 0.0)
    a5 = a1 @ w2.T + b2
    a5 = a5 - jnp.max(a5)
    return jax.nn.softmax(a5, axis=0)[None, :]


def reference_forward_batched(xb, w1, b1, w2, b2):
    h = jnp.maximum(xb @ w1.T + b1, 0.0)
    a5 = h @ w2.T + b2
    a5 = a5 - jnp.max(a5, axis=-1, keepdims=True)
    return jax.nn.softmax(a5, axis=-1)


# TODO(synk): GraphConv / TopKPooling / Dropout exist in __init__ but are unused
# in forward(); normalize_features is host-side preprocessing. Neither is kernelized.

if __name__ == "__main__":
    key = jax.random.PRNGKey(0)
    k_x, k_w1, k_b1, k_w2, k_b2, k_xb = jax.random.split(key, 6)

    num_nodes = 8
    # Deterministic synthetic parameters (torch nn.Linear weight layout: (out, in)).
    x = jax.random.normal(k_x, (num_nodes, NODE_FEAT), jnp.float32)
    bound1 = 1.0 / jnp.sqrt(NODE_FEAT)
    w1 = jax.random.uniform(k_w1, (HIDDEN, NODE_FEAT), jnp.float32, -bound1, bound1)
    b1 = jax.random.uniform(k_b1, (HIDDEN,), jnp.float32, -bound1, bound1)
    bound2 = 1.0 / jnp.sqrt(HIDDEN)
    w2 = jax.random.uniform(k_w2, (N_ACTIONS, HIDDEN), jnp.float32, -bound2, bound2)
    b2 = jax.random.uniform(k_b2, (N_ACTIONS,), jnp.float32, -bound2, bound2)

    # Pack parameters once (hoisted out of the per-call path).
    params = pack_params(w1, b1, w2, b2)

    # --- single-graph forward (the module's forward) ---
    probs = jax.block_until_ready(policy_forward(x, params))
    ref = reference_forward(x, w1, b1, w2, b2)
    assert probs.shape == (1, N_ACTIONS)
    assert jnp.allclose(probs, ref, atol=1e-4, rtol=1e-4), (probs, ref)
    assert jnp.allclose(jnp.sum(probs), 1.0, atol=1e-5)

    # --- batched throughput path: 256 graphs' row-0 features ---
    xb = jax.random.normal(k_xb, (256, NODE_FEAT), jnp.float32)
    probs_b = jax.block_until_ready(policy_forward_batched(xb, params))
    ref_b = reference_forward_batched(xb, w1, b1, w2, b2)
    assert probs_b.shape == (256, N_ACTIONS)
    assert jnp.allclose(probs_b, ref_b, atol=1e-4, rtol=1e-4)
    assert jnp.allclose(jnp.sum(probs_b, axis=-1), 1.0, atol=1e-5)

    print("KERNEL_OK")
</pallas_src>

<mosaic_0001>
module attributes {stable_mosaic.version = 11 : i64} {
  func.func @policy_kernel(%arg0: i32, %arg1: memref<8x12xf32, #tpu.memory_space<vmem>>, %arg2: memref<32x12xf32, #tpu.memory_space<vmem>>, %arg3: memref<1x10xf32, #tpu.memory_space<vmem>>) attributes {dimension_semantics = [#tpu.dimension_semantics<arbitrary>], iteration_bounds = array<i64: 1>, scalar_prefetch = 0 : i64, scratch_operands = 0 : i64, tpu.core_type = #tpu.core_type<tc>, window_params = [{pipeline_mode = #tpu.pipeline_mode<synchronous>, transform_indices = @transform_0, window_bounds = array<i64: 8, 12>}, {pipeline_mode = #tpu.pipeline_mode<synchronous>, transform_indices = @transform_1, window_bounds = array<i64: 32, 12>}, {pipeline_mode = #tpu.pipeline_mode<synchronous>, transform_indices = @transform_2, window_bounds = array<i64: 1, 10>}]} {
    %c0 = arith.constant 0 : index
    %c0_0 = arith.constant 0 : index
    %0 = vector.load %arg1[%c0, %c0_0] : memref<8x12xf32, #tpu.memory_space<vmem>>, vector<1x12xf32>
    %c0_1 = arith.constant 0 : index
    %c0_2 = arith.constant 0 : index
    %1 = vector.load %arg2[%c0_1, %c0_2] : memref<32x12xf32, #tpu.memory_space<vmem>>, vector<12x12xf32>
    %c12 = arith.constant 12 : index
    %c0_3 = arith.constant 0 : index
    %2 = vector.load %arg2[%c12, %c0_3] : memref<32x12xf32, #tpu.memory_space<vmem>>, vector<1x12xf32>
    %c16 = arith.constant 16 : index
    %c0_4 = arith.constant 0 : index
    %3 = vector.load %arg2[%c16, %c0_4] : memref<32x12xf32, #tpu.memory_space<vmem>>, vector<12x12xf32>
    %c28 = arith.constant 28 : index
    %c0_5 = arith.constant 0 : index
    %4 = vector.load %arg2[%c28, %c0_5] : memref<32x12xf32, #tpu.memory_space<vmem>>, vector<1x12xf32>
    %cst = arith.constant dense<0.000000e+00> : vector<1x12xf32>
    %5 = tpu.matmul %0, %1, %cst {dimension_numbers = #tpu.dot_dimension_numbers<[1], [0], [0], [1], [0, 0, 1, 1], [], []>} : vector<1x12xf32>, vector<12x12xf32>, vector<1x12xf32> -> vector<1x12xf32>
    %6 = arith.addf %5, %2 : vector<1x12xf32>
    %cst_6 = arith.constant 0.000000e+00 : f32
    %7 = vector.broadcast %cst_6 : f32 to vector<1x12xf32>
    %8 = arith.maximumf %6, %7 : vector<1x12xf32>
    %cst_7 = arith.constant dense<0.000000e+00> : vector<1x12xf32>
    %9 = tpu.matmul %8, %3, %cst_7 {dimension_numbers = #tpu.dot_dimension_numbers<[1], [0], [0], [1], [0, 0, 1, 1], [], []>} : vector<1x12xf32>, vector<12x12xf32>, vector<1x12xf32> -> vector<1x12xf32>
    %10 = arith.addf %9, %4 : vector<1x12xf32>
    %cst_8 = arith.constant dense<0xFF800000> : vector<1xf32>
    %11 = vector.multi_reduction <maximumf>, %10, %cst_8 [1] : vector<1x12xf32> to vector<1xf32>
    %12 = vector.shape_cast %11 : vector<1xf32> to vector<1x1xf32>
    %13 = vector.broadcast %12 : vector<1x1xf32> to vector<1x12xf32>
    %14 = arith.subf %10, %13 : vector<1x12xf32>
    %15 = math.exp %14 : vector<1x12xf32>
    %cst_9 = arith.constant dense<0.000000e+00> : vector<1xf32>
    %16 = vector.multi_reduction <add>, %15, %cst_9 [1] : vector<1x12xf32> to vector<1xf32>
    %17 = vector.shape_cast %16 : vector<1xf32> to vector<1x1xf32>
    %18 = vector.broadcast %17 : vector<1x1xf32> to vector<1x12xf32>
    %19 = arith.divf %15, %18 : vector<1x12xf32>
    %20 = vector.extract_strided_slice %19 {offsets = [0, 0], sizes = [1, 10], strides = [1, 1]} : vector<1x12xf32> to vector<1x10xf32>
    %c0_10 = arith.constant 0 : index
    %c0_11 = arith.constant 0 : index
    %21 = vector.load %arg3[%c0_10, %c0_11] : memref<1x10xf32, #tpu.memory_space<vmem>>, vector<1x10xf32>
    tpu.vector_store %arg3[%c0_10, %c0_11], %20 {strides = array<i32>} : memref<1x10xf32, #tpu.memory_space<vmem>>, vector<1x10xf32>,
    return
  }
  func.func @transform_0(%arg0: i32) -> (i32, i32) {
    %c0_i32 = arith.constant 0 : i32
    %c0_i32_0 = arith.constant 0 : i32
    %c0_i32_1 = arith.constant 0 : i32
    return %c0_i32, %c0_i32_0 : i32, i32
  }
  func.func @transform_1(%arg0: i32) -> (i32, i32) {
    %c0_i32 = arith.constant 0 : i32
    %c0_i32_0 = arith.constant 0 : i32
    %c0_i32_1 = arith.constant 0 : i32
    return %c0_i32, %c0_i32_0 : i32, i32
  }
  func.func @transform_2(%arg0: i32) -> (i32, i32) {
    %c0_i32 = arith.constant 0 : i32
    %c0_i32_0 = arith.constant 0 : i32
    %c0_i32_1 = arith.constant 0 : i32
    return %c0_i32, %c0_i32_0 : i32, i32
  }
}

</mosaic_0001>

<llo_original>
// kernel: policy_forward.1
$region0: #{policy_forward.1}
  #allocation0 [shape = 'u32[]', space=smem, size = 0x4, offset = 0x4, fixed_abs, tag = 'smem constant byte address 0x4 - core index']
  #allocation1 [shape = 'u32[144,128]{1,0:T(1,128)}', space=vmem, size = 0x12000, scoped, tag = 'internal scratch']
  %s0 = inlined_call_operand.vmem [shape: f32[8,12], index: 0, kind: input, shape index: {}]
  %s1 = inlined_call_operand.vmem [shape: f32[32,12], index: 1, kind: input, shape index: {}]
  %s2 = inlined_call_operand.hbm [shape: f32[1,10], index: 2, kind: output, shape index: {}]
  %s3 = sld [smem:[#allocation0]]
  $region18: #{policy_forward.1} parent=0
    _
  %s5 = ssub.s32 1, %s3
  %s6 = scalar_select 0, %s5, %s3
  $region1: #{policy_forward.1} parent=0
    #allocation2 [shape = 'u8[512]{0}', space=vmem, size = 0x400, scoped, tag = 'output window, operand 0, single buffered']
    #allocation3 [shape = 's32[1]{0}', space=sflag, size = 0x4, scoped, tag = 'scoped memory for policy_forward.1']
    %7 = vsyncpa [#allocation3], 0
    // Predicated region
    $region2: #{policy_forward.1} parent=1 // pred_check
      _
    $region3: #{policy_forward.1} parent=1 // pred_check_branch
      %9 = sbr.rel (0) target = $region5
    $region4: #{policy_forward.1} parent=1 // pred_region
      _
    $region5: #{policy_forward.1} parent=1 // pred_fallthru
      _
    // Predicated region
    $region6: #{policy_forward.1} parent=1 // pred_check
      _
    $region7: #{policy_forward.1} parent=1 // pred_check_branch
      %11 = sbr.rel (0) target = $region9
    $region8: #{policy_forward.1} parent=1 // pred_region
      _
    $region9: #{policy_forward.1} parent=1 // pred_fallthru
      _
    %v12 = vld [vmem:[%s0] sm:$0x1]
    %v13 = vld [vmem:[%s1] sm:$0xff]
    %v14 = vld [vmem:[%s1 + $0x8] sm:$0xf]
    %v15 = vld [vmem:[%s1 + $0xc] sm:$0x1]
    %v16 = vld [vmem:[%s1 + $0x10] sm:$0xff]
    %v17 = vld [vmem:[%s1 + $0x18] sm:$0xf]
    %v18 = vld [vmem:[%s1 + $0x1c] sm:$0x1]
    %vm19 = vcmask 97280
    %v21 = vsel %vm19, %v12, 0
    %vm23 = vcmask 1043456
    %v25 = vsel %vm23, %v14, 0
    %27 = vmatprep.subr.mxu0 0.0
    %28 = vmatpush1.msra.mxu0 %v13
    %29 = vmatprep.subr.mxu0 0.0
    %30 = vmatpush1.msra.mxu0 %v25
    %31 = vmatprep.subr.mxu0 0.0
    %32 = vmatpush1.msra.mxu0 0.0
    %33 = vmatprep.subr.mxu0 0.0
    %34 = vmatpush1.msra.mxu0 0.0
    %35 = vmatprep.subr.mxu0 0.0
    %36 = vmatpush1.msra.mxu0 0.0
    %37 = vmatprep.subr.mxu0 0.0
    %38 = vmatpush1.msra.mxu0 0.0
    %39 = vmatprep.subr.mxu0 0.0
    %40 = vmatpush1.msra.mxu0 0.0
    %41 = vmatprep.subr.mxu0 0.0
    %42 = vmatpush1.msra.mxu0 0.0
    %43 = vmatprep.subr.mxu0 0.0
    %44 = vmatpush1.msra.mxu0 0.0
    %45 = vmatprep.subr.mxu0 0.0
    %46 = vmatpush1.msra.mxu0 0.0
    %47 = vmatprep.subr.mxu0 0.0
    %48 = vmatpush1.msra.mxu0 0.0
    %49 = vmatprep.subr.mxu0 0.0
    %50 = vmatpush1.msra.mxu0 0.0
    %51 = vmatprep.subr.mxu0 0.0
    %52 = vmatpush1.msra.mxu0 0.0
    %53 = vmatprep.subr.mxu0 0.0
    %54 = vmatpush1.msra.mxu0 0.0
    %55 = vmatprep.subr.mxu0 0.0
    %56 = vmatpush1.msra.mxu0 0.0
    %57 = vmatprep.subr.mxu0 0.0
    %58 = vmatpush1.msra.mxu0 0.0
    %59 = vmatprep.subr.mxu0 0.0
    %60 = vmatpush1.msra.mxu0 0.0
    %61 = vmatprep.subr.mxu0 0.0
    %62 = vmatpush1.msra.mxu0 0.0
    %63 = vmatprep.subr.mxu0 0.0
    %64 = vmatpush1.msra.mxu0 0.0
    %65 = vmatprep.subr.mxu0 0.0
    %66 = vmatpush1.msra.mxu0 0.0
    %67 = vmatprep.subr.mxu0 0.0
    %68 = vmatpush1.msra.mxu0 0.0
    %69 = vmatprep.subr.mxu0 0.0
    %70 = vmatpush1.msra.mxu0 0.0
    %71 = vmatprep.subr.mxu0 0.0
    %72 = vmatpush1.msra.mxu0 0.0
    %73 = vmatprep.subr.mxu0 0.0
    %74 = vmatpush1.msra.mxu0 0.0
    %75 = vmatprep.subr.mxu0 0.0
    %76 = vmatpush1.msra.mxu0 0.0
    %77 = vmatprep.subr.mxu0 0.0
    %78 = vmatpush1.msra.mxu0 0.0
    %79 = vmatprep.subr.mxu0 0.0
    %80 = vmatpush1.msra.mxu0 0.0
    %81 = vmatprep.subr.mxu0 0.0
    %82 = vmatpush1.msra.mxu0 0.0
    %83 = vmatprep.subr.mxu0 0.0
    %84 = vmatpush1.msra.mxu0 0.0
    %85 = vmatprep.subr.mxu0 0.0
    %86 = vmatpush1.msra.mxu0 0.0
    %87 = vmatprep.subr.mxu0 0.0
    %88 = vmatpush1.msra.mxu0 0.0
    %89 = vmatprep.subr.mxu0 0.0
    %90 = vmatpush1.msra.mxu0 0.0
    %91 = vmatprep.mubr.f32.mxu0 0.0
    %92 = vmatmul.mubr.f32.gmra.mrb[0].mxu0 %v21
    %v93 = vpop.f32.mrb[0].mxu0
    %v94 = vadd.f32 %v15, %v93
    %v95 = vpop.f32.mrb[0].mxu0
    %96 = vdwg.mxu0
    %v97 = vmax.f32 %v94, 0.0
    %v99 = vsel %vm19, %v97, 0
    %v102 = vsel %vm23, %v17, 0
    %104 = vmatprep.subr.mxu0 0.0
    %105 = vmatpush1.msra.mxu0 %v16
    %106 = vmatprep.subr.mxu0 0.0
    %107 = vmatpush1.msra.mxu0 %v102
    %108 = vmatprep.subr.mxu0 0.0
    %109 = vmatpush1.msra.mxu0 0.0
    %110 = vmatprep.subr.mxu0 0.0
    %111 = vmatpush1.msra.mxu0 0.0
    %112 = vmatprep.subr.mxu0 0.0
    %113 = vmatpush1.msra.mxu0 0.0
    %114 = vmatprep.subr.mxu0 0.0
    %115 = vmatpush1.msra.mxu0 0.0
    %116 = vmatprep.subr.mxu0 0.0
    %117 = vmatpush1.msra.mxu0 0.0
    %118 = vmatprep.subr.mxu0 0.0
    %119 = vmatpush1.msra.mxu0 0.0
    %120 = vmatprep.subr.mxu0 0.0
    %121 = vmatpush1.msra.mxu0 0.0
    %122 = vmatprep.subr.mxu0 0.0
    %123 = vmatpush1.msra.mxu0 0.0
    %124 = vmatprep.subr.mxu0 0.0
    %125 = vmatpush1.msra.mxu0 0.0
    %126 = vmatprep.subr.mxu0 0.0
    %127 = vmatpush1.msra.mxu0 0.0
    %128 = vmatprep.subr.mxu0 0.0
    %129 = vmatpush1.msra.mxu0 0.0
    %130 = vmatprep.subr.mxu0 0.0
    %131 = vmatpush1.msra.mxu0 0.0
    %132 = vmatprep.subr.mxu0 0.0
    %133 = vmatpush1.msra.mxu0 0.0
    %134 = vmatprep.subr.mxu0 0.0
    %135 = vmatpush1.msra.mxu0 0.0
    %136 = vmatprep.subr.mxu0 0.0
    %137 = vmatpush1.msra.mxu0 0.0
    %138 = vmatprep.subr.mxu0 0.0
    %139 = vmatpush1.msra.mxu0 0.0
    %140 = vmatprep.subr.mxu0 0.0
    %141 = vmatpush1.msra.mxu0 0.0
    %142 = vmatprep.subr.mxu0 0.0
    %143 = vmatpush1.msra.mxu0 0.0
    %144 = vmatprep.subr.mxu0 0.0
    %145 = vmatpush1.msra.mxu0 0.0
    %146 = vmatprep.subr.mxu0 0.0
    %147 = vmatpush1.msra.mxu0 0.0
    %148 = vmatprep.subr.mxu0 0.0
    %149 = vmatpush1.msra.mxu0 0.0
    %150 = vmatprep.subr.mxu0 0.0
    %151 = vmatpush1.msra.mxu0 0.0
    %152 = vmatprep.subr.mxu0 0.0
    %153 = vmatpush1.msra.mxu0 0.0
    %154 = vmatprep.subr.mxu0 0.0
    %155 = vmatpush1.msra.mxu0 0.0
    %156 = vmatprep.subr.mxu0 0.0
    %157 = vmatpush1.msra.mxu0 0.0
    %158 = vmatprep.subr.mxu0 0.0
    %159 = vmatpush1.msra.mxu0 0.0
    %160 = vmatprep.subr.mxu0 0.0
    %161 = vmatpush1.msra.mxu0 0.0
    %162 = vmatprep.subr.mxu0 0.0
    %163 = vmatpush1.msra.mxu0 0.0
    %164 = vmatprep.subr.mxu0 0.0
    %165 = vmatpush1.msra.mxu0 0.0
    %166 = vmatprep.subr.mxu0 0.0
    %167 = vmatpush1.msra.mxu0 0.0
    %168 = vmatprep.mubr.f32.mxu0 0.0
    %169 = vmatmul.mubr.f32.gmra.mrb[0].mxu0 %v99
    %v170 = vpop.f32.mrb[0].mxu0
    %v171 = vadd.f32 %v18, %v170
    %v172 = vpop.f32.mrb[0].mxu0
    %173 = vdwg.mxu0
    %vm174 = vcmask 90112
    %v175 = vsel %vm174, %v171, -inf
    %176 = vmax.xlane.f32.xlu0 %v175
    %v177 = vpop.xlane.xlu0 %176
    %v178 = vsub.f32 %v171, %v177
    %v179 = vmul.f32 %v178, 1.442695
    %v180 = vpow.pop %v179
    %v181 = vsel %vm174, %v180, 0.0
    %182 = vadd.xlane.f32.xlu0 %v181
    %v183 = vpop.xlane.xlu0 %182
    %v184 = vrcp.pop %v183
    %v185 = vmul.f32 %v180, %v184
    %vm186 = vcmask 73728
    %187 = vst.msk [vmem:[#allocation2] sm:$0x1] %vm186, %v185
    // Predicated region
    $region10: #{policy_forward.1} parent=1 // pred_check
      _
    $region11: #{policy_forward.1} parent=1 // pred_check_branch
      %189 = sbr.rel (0) target = $region13
    $region12: #{policy_forward.1} parent=1 // pred_region
      %s191 = ssub.s32 16, 16
      %192 = vsyncadd [#allocation3], %s191
      %s194 = sshll.u32 [#allocation2], 4
      %s195 = int_to_ptr.vmem [resolvable:$true] %s194
      %197 = dma.vmem_to_hbm [thread:$0]  %s195, 16, %s2, [#allocation3]
    $region13: #{policy_forward.1} parent=1 // pred_fallthru
      _
    // Predicated region
    $region14: #{policy_forward.1} parent=1 // pred_check
      _
    $region15: #{policy_forward.1} parent=1 // pred_check_branch
      %199 = sbr.rel (0) target = $region17
    $region16: #{policy_forward.1} parent=1 // pred_region
      %200 = dma.done [#allocation3], 16
    $region17: #{policy_forward.1} parent=1 // pred_fallthru
      _
    %201 = vsyncpa [#allocation3], 1

</llo_original>
